<compile_context>
chip_gen: v6e
topology: v6e:2x2x1
jax: 0.10.0
libtpu: 0.0.40
codegen_flags: <defaults>
</compile_context>

<pallas_src>
import math
import jax
import jax.numpy as jnp
from jax.experimental import pallas as pl
from jax.experimental.pallas import tpu as pltpu


def _make_ts_lora_kernel(n_tasks, rank):
    def kernel(x_ref, wT_ref, b_ref, a_all_ref, b_all_ref,
               shared_ref, tasks_ref, p_ref):
        j = pl.program_id(1)

        # Fused low-rank down-projection for TA + all tasks, computed once per
        # row tile (j == 0) and reused across all Cout tiles from VMEM scratch.
        @pl.when(j == 0)
        def _():
            p_ref[...] = jnp.dot(x_ref[...], a_all_ref[...],
                                 preferred_element_type=jnp.float32)

        x = x_ref[...]                                             # (tm, Cin)

        # --- base linear: (tm, Cin) @ (Cin, tn) on the MXU, f32 accumulation ---
        base = jnp.dot(x, wT_ref[...],
                       preferred_element_type=jnp.float32) + b_ref[...]

        p = p_ref[...]                                             # (tm, (T+1)*R)

        # --- TA_LoRA (alpha already folded into B_all) ---
        shared = base + jnp.dot(p[:, :rank], b_all_ref[0],
                                preferred_element_type=jnp.float32)
        shared_ref[...] = shared.astype(shared_ref.dtype)

        # --- per-task TS_LoRA, static unroll; up-projection is only (tm,R)@(R,tn) ---
        for t in range(n_tasks):
            lo = (t + 1) * rank
            ts = jnp.dot(p[:, lo:lo + rank], b_all_ref[t + 1],
                         preferred_element_type=jnp.float32)
            tasks_ref[t] = (shared + ts).astype(tasks_ref.dtype)

    return kernel


def _round_up(x, m):
    return ((x + m - 1) // m) * m


def _pick_tile_n(cout, want):
    """Largest multiple of 128 that divides Cout and is <= want; else full Cout."""
    if cout % 128 != 0:
        return cout
    best = 128
    d = 256
    while d <= min(want, cout):
        if cout % d == 0:
            best = d
        d += 128
    return best


def ts_lora_forward(x, wT, bias, lora_A_ta, lora_B_ta, lora_A_tasks,
                    lora_B_tasks, *, lora_alpha=1.0, tile_m=256, tile_n=256):
    """x: (M, Cin) tokens-major. Returns (shared (M, Cout), tasks (T, M, Cout))."""
    M, Cin = x.shape
    Cout = wT.shape[1]
    T, _, R = lora_A_tasks.shape

    # ---- weight prep (once per call, outside the per-token hot path) ----
    # Fused down-projection: columns [0:R] = TA, [(t+1)*R : (t+2)*R] = task t.
    a_stack = jnp.concatenate([lora_A_ta[None], lora_A_tasks], axis=0)    # (T+1,Cin,R)
    a_all = jnp.transpose(a_stack, (1, 0, 2)).reshape(Cin, (T + 1) * R)   # (Cin,(T+1)R)
    # Fold lora_alpha into the up-projections (rank-R sized, scaled once).
    b_all = (jnp.concatenate([lora_B_ta[None], lora_B_tasks], axis=0)
             * jnp.asarray(lora_alpha, x.dtype))                          # (T+1,R,Cout)

    # ---- tile sizing ----
    # Rows: big tiles for MXU utilization, clamped for tiny inputs, multiple of 8 (f32).
    tile_m = max(8, _round_up(min(tile_m, _round_up(M, 8)), 8))
    # Lanes: multiple of 128 that divides Cout, else the full lane extent.
    tile_n = _pick_tile_n(Cout, tile_n)
    Mp = _round_up(M, tile_m)
    if Mp != M:                       # pad tokens so the M grid divides evenly
        x = jnp.pad(x, ((0, Mp - M), (0, 0)))

    grid = (Mp // tile_m, Cout // tile_n)
    kernel = _make_ts_lora_kernel(T, R)

    itemsize = jnp.dtype(x.dtype).itemsize
    flops = (2 * Mp * Cout * Cin                      # base linear
             + 2 * Mp * Cin * (T + 1) * R             # fused down-projection (once/row)
             + 2 * Mp * (T + 1) * R * Cout)           # up-projections
    bytes_accessed = int(itemsize * (Mp * Cin + Cin * Cout + Cout
                                     + a_all.size + b_all.size
                                     + (T + 1) * Mp * Cout))

    shared, tasks = pl.pallas_call(
        kernel,
        out_shape=(
            jax.ShapeDtypeStruct((Mp, Cout), x.dtype),
            jax.ShapeDtypeStruct((T, Mp, Cout), x.dtype),
        ),
        grid_spec=pltpu.PrefetchScalarGridSpec(
            num_scalar_prefetch=0,
            grid=grid,
            in_specs=[
                pl.BlockSpec((tile_m, Cin), lambda i, j: (i, 0)),          # x row tile
                pl.BlockSpec((Cin, tile_n), lambda i, j: (0, j)),          # W^T N-tile
                pl.BlockSpec((1, tile_n), lambda i, j: (0, j)),            # bias N-tile
                pl.BlockSpec((Cin, (T + 1) * R), lambda i, j: (0, 0)),     # A_all (tiny, grid-invariant)
                pl.BlockSpec((T + 1, R, tile_n), lambda i, j: (0, 0, j)),  # B_all N-tile
            ],
            out_specs=[
                pl.BlockSpec((tile_m, tile_n), lambda i, j: (i, j)),
                pl.BlockSpec((T, tile_m, tile_n), lambda i, j: (0, i, j)),
            ],
            scratch_shapes=[
                pltpu.VMEM((tile_m, (T + 1) * R), jnp.float32),            # cached x@A_all
            ],
        ),
        compiler_params=pltpu.CompilerParams(
            # N axis carries the cached down-projection -> must be "arbitrary";
            # M axis is independent -> "parallel" for megacore sharding.
            dimension_semantics=("parallel", "arbitrary"),
            vmem_limit_bytes=64 * 1024 * 1024,
        ),
        cost_estimate=pl.CostEstimate(
            flops=flops, transcendentals=0, bytes_accessed=bytes_accessed),
    )(x, wT, bias.reshape(1, Cout), a_all, b_all)

    return shared[:M], tasks[:, :M, :]


def kaiming_uniform(key, shape, a=math.sqrt(5)):
    # matches torch.nn.init.kaiming_uniform_ fan_in convention (fan_in = shape[0])
    fan_in = shape[0]
    gain = math.sqrt(2.0 / (1.0 + a * a))
    bound = gain * math.sqrt(3.0 / fan_in)
    return jax.random.uniform(key, shape, jnp.float32, -bound, bound)


if __name__ == "__main__":
    # Small shapes consistent with the module: tokens = batch*seq, Cin, Cout.
    batch, seq = 2, 8
    Cin, Cout, rank = 32, 32, 4
    tasks = ["task1", "task2"]
    T = len(tasks)
    alpha = 1.0

    key = jax.random.PRNGKey(0)
    keys = jax.random.split(key, 8)

    x = jax.random.normal(keys[0], (batch, seq, Cin), jnp.float32)

    # Base nn.Linear params (deterministic synthetic init).
    W = jax.random.normal(keys[1], (Cout, Cin), jnp.float32) * 0.05
    bias = jax.random.normal(keys[2], (Cout,), jnp.float32) * 0.05

    # LoRA params. PyTorch __init__ zeros lora_B; we use a small deterministic
    # non-zero init so the LoRA path actually exercises the kernel.
    A_ta = kaiming_uniform(keys[3], (Cin, rank))
    B_ta = jax.random.normal(keys[4], (rank, Cout), jnp.float32) * 0.05
    A_tasks = jnp.stack(
        [kaiming_uniform(k, (Cin, rank)) for k in jax.random.split(keys[5], T)])
    B_tasks = jax.random.normal(keys[6], (T, rank, Cout), jnp.float32) * 0.05

    x2d = x.reshape(batch * seq, Cin)
    shared, task_out = ts_lora_forward(
        x2d, W.T, bias, A_ta, B_ta, A_tasks, B_tasks, lora_alpha=alpha)
    jax.block_until_ready(shared)
    jax.block_until_ready(task_out)

    # Assemble the module-style output dict (shapes restored to (batch, seq, Cout)).
    out = {"shared": shared.reshape(batch, seq, Cout)}
    for i, t in enumerate(tasks):
        out[t] = task_out[i].reshape(batch, seq, Cout)

    # Pure-JAX reference check.
    base_ref = x2d @ W.T + bias
    shared_ref = base_ref + (x2d @ A_ta @ B_ta) * alpha
    assert jnp.allclose(shared, shared_ref, atol=1e-5, rtol=1e-5)
    for i, t in enumerate(tasks):
        ref_t = shared_ref + (x2d @ A_tasks[i] @ B_tasks[i]) * alpha
        assert jnp.allclose(task_out[i], ref_t, atol=1e-5, rtol=1e-5)

    print("KERNEL_OK")
</pallas_src>

<mosaic_0001>
module attributes {stable_mosaic.version = 11 : i64} {
  func.func @kernel(%arg0: i32, %arg1: i32, %arg2: memref<16x32xf32, #tpu.memory_space<vmem>>, %arg3: memref<32x32xf32, #tpu.memory_space<vmem>>, %arg4: memref<1x32xf32, #tpu.memory_space<vmem>>, %arg5: memref<32x12xf32, #tpu.memory_space<vmem>>, %arg6: memref<3x4x32xf32, #tpu.memory_space<vmem>>, %arg7: memref<16x32xf32, #tpu.memory_space<vmem>>, %arg8: memref<2x16x32xf32, #tpu.memory_space<vmem>>, %arg9: memref<16x12xf32, #tpu.memory_space<vmem>>) attributes {dimension_semantics = [#tpu.dimension_semantics<parallel>, #tpu.dimension_semantics<arbitrary>], iteration_bounds = array<i64: 1, 1>, scalar_prefetch = 0 : i64, scratch_operands = 1 : i64, tpu.core_type = #tpu.core_type<tc>, window_params = [{transform_indices = @transform_0, window_bounds = array<i64: 16, 32>}, {transform_indices = @transform_1, window_bounds = array<i64: 32, 32>}, {transform_indices = @transform_2, window_bounds = array<i64: 1, 32>}, {pipeline_mode = #tpu.pipeline_mode<synchronous>, transform_indices = @transform_3, window_bounds = array<i64: 32, 12>}, {transform_indices = @transform_4, window_bounds = array<i64: 3, 4, 32>}, {transform_indices = @transform_5, window_bounds = array<i64: 16, 32>}, {transform_indices = @transform_6, window_bounds = array<i64: 2, 16, 32>}]} {
    %c0_i32 = arith.constant 0 : i32
    %0 = arith.cmpi eq, %arg1, %c0_i32 : i32
    %1 = arith.extui %0 : i1 to i32
    %c0_i32_0 = arith.constant 0 : i32
    %2 = arith.cmpi ne, %1, %c0_i32_0 : i32
    scf.if %2 {
      %c0_26 = arith.constant 0 : index
      %c0_27 = arith.constant 0 : index
      %32 = vector.load %arg2[%c0_26, %c0_27] : memref<16x32xf32, #tpu.memory_space<vmem>>, vector<16x32xf32>
      %c0_28 = arith.constant 0 : index
      %c0_29 = arith.constant 0 : index
      %33 = vector.load %arg5[%c0_28, %c0_29] : memref<32x12xf32, #tpu.memory_space<vmem>>, vector<32x12xf32>
      %cst_30 = arith.constant dense<0.000000e+00> : vector<16x12xf32>
      %34 = tpu.matmul %32, %33, %cst_30 {dimension_numbers = #tpu.dot_dimension_numbers<[1], [0], [0], [1], [0, 0, 1, 1], [], []>} : vector<16x32xf32>, vector<32x12xf32>, vector<16x12xf32> -> vector<16x12xf32>
      %c0_31 = arith.constant 0 : index
      %c0_32 = arith.constant 0 : index
      %35 = vector.load %arg9[%c0_31, %c0_32] : memref<16x12xf32, #tpu.memory_space<vmem>>, vector<16x12xf32>
      tpu.vector_store %arg9[%c0_31, %c0_32], %34 {strides = array<i32>} : memref<16x12xf32, #tpu.memory_space<vmem>>, vector<16x12xf32>,
    } else {
    }
    %c0 = arith.constant 0 : index
    %c0_1 = arith.constant 0 : index
    %3 = vector.load %arg2[%c0, %c0_1] : memref<16x32xf32, #tpu.memory_space<vmem>>, vector<16x32xf32>
    %c0_2 = arith.constant 0 : index
    %c0_3 = arith.constant 0 : index
    %4 = vector.load %arg3[%c0_2, %c0_3] : memref<32x32xf32, #tpu.memory_space<vmem>>, vector<32x32xf32>
    %cst = arith.constant dense<0.000000e+00> : vector<16x32xf32>
    %5 = tpu.matmul %3, %4, %cst {dimension_numbers = #tpu.dot_dimension_numbers<[1], [0], [0], [1], [0, 0, 1, 1], [], []>} : vector<16x32xf32>, vector<32x32xf32>, vector<16x32xf32> -> vector<16x32xf32>
    %c0_4 = arith.constant 0 : index
    %c0_5 = arith.constant 0 : index
    %6 = vector.load %arg4[%c0_4, %c0_5] : memref<1x32xf32, #tpu.memory_space<vmem>>, vector<1x32xf32>
    %7 = vector.broadcast %6 : vector<1x32xf32> to vector<16x32xf32>
    %8 = arith.addf %5, %7 : vector<16x32xf32>
    %c0_6 = arith.constant 0 : index
    %c0_7 = arith.constant 0 : index
    %9 = vector.load %arg9[%c0_6, %c0_7] : memref<16x12xf32, #tpu.memory_space<vmem>>, vector<16x12xf32>
    %10 = vector.extract_strided_slice %9 {offsets = [0, 0], sizes = [16, 4], strides = [1, 1]} : vector<16x12xf32> to vector<16x4xf32>
    %c0_8 = arith.constant 0 : index
    %c0_9 = arith.constant 0 : index
    %c0_10 = arith.constant 0 : index
    %11 = vector.load %arg6[%c0_8, %c0_9, %c0_10] : memref<3x4x32xf32, #tpu.memory_space<vmem>>, vector<1x4x32xf32>
    %12 = vector.shape_cast %11 : vector<1x4x32xf32> to vector<4x32xf32>
    %cst_11 = arith.constant dense<0.000000e+00> : vector<16x32xf32>
    %13 = tpu.matmul %10, %12, %cst_11 {dimension_numbers = #tpu.dot_dimension_numbers<[1], [0], [0], [1], [0, 0, 1, 1], [], []>} : vector<16x4xf32>, vector<4x32xf32>, vector<16x32xf32> -> vector<16x32xf32>
    %14 = arith.addf %8, %13 : vector<16x32xf32>
    %c0_12 = arith.constant 0 : index
    %c0_13 = arith.constant 0 : index
    %15 = vector.load %arg7[%c0_12, %c0_13] : memref<16x32xf32, #tpu.memory_space<vmem>>, vector<16x32xf32>
    tpu.vector_store %arg7[%c0_12, %c0_13], %14 {strides = array<i32>} : memref<16x32xf32, #tpu.memory_space<vmem>>, vector<16x32xf32>,
    %16 = vector.extract_strided_slice %9 {offsets = [0, 4], sizes = [16, 4], strides = [1, 1]} : vector<16x12xf32> to vector<16x4xf32>
    %c1 = arith.constant 1 : index
    %c0_14 = arith.constant 0 : index
    %c0_15 = arith.constant 0 : index
    %17 = vector.load %arg6[%c1, %c0_14, %c0_15] : memref<3x4x32xf32, #tpu.memory_space<vmem>>, vector<1x4x32xf32>
    %18 = vector.shape_cast %17 : vector<1x4x32xf32> to vector<4x32xf32>
    %cst_16 = arith.constant dense<0.000000e+00> : vector<16x32xf32>
    %19 = tpu.matmul %16, %18, %cst_16 {dimension_numbers = #tpu.dot_dimension_numbers<[1], [0], [0], [1], [0, 0, 1, 1], [], []>} : vector<16x4xf32>, vector<4x32xf32>, vector<16x32xf32> -> vector<16x32xf32>
    %20 = arith.addf %14, %19 : vector<16x32xf32>
    %c0_17 = arith.constant 0 : index
    %c0_18 = arith.constant 0 : index
    %c0_19 = arith.constant 0 : index
    %21 = vector.load %arg8[%c0_17, %c0_18, %c0_19] : memref<2x16x32xf32, #tpu.memory_space<vmem>>, vector<1x16x32xf32>
    %22 = vector.shape_cast %21 : vector<1x16x32xf32> to vector<16x32xf32>
    %23 = vector.shape_cast %20 : vector<16x32xf32> to vector<1x16x32xf32>
    tpu.vector_store %arg8[%c0_17, %c0_18, %c0_19], %23 {strides = array<i32>} : memref<2x16x32xf32, #tpu.memory_space<vmem>>, vector<1x16x32xf32>,
    %24 = vector.extract_strided_slice %9 {offsets = [0, 8], sizes = [16, 4], strides = [1, 1]} : vector<16x12xf32> to vector<16x4xf32>
    %c2 = arith.constant 2 : index
    %c0_20 = arith.constant 0 : index
    %c0_21 = arith.constant 0 : index
    %25 = vector.load %arg6[%c2, %c0_20, %c0_21] : memref<3x4x32xf32, #tpu.memory_space<vmem>>, vector<1x4x32xf32>
    %26 = vector.shape_cast %25 : vector<1x4x32xf32> to vector<4x32xf32>
    %cst_22 = arith.constant dense<0.000000e+00> : vector<16x32xf32>
    %27 = tpu.matmul %24, %26, %cst_22 {dimension_numbers = #tpu.dot_dimension_numbers<[1], [0], [0], [1], [0, 0, 1, 1], [], []>} : vector<16x4xf32>, vector<4x32xf32>, vector<16x32xf32> -> vector<16x32xf32>
    %28 = arith.addf %14, %27 : vector<16x32xf32>
    %c1_23 = arith.constant 1 : index
    %c0_24 = arith.constant 0 : index
    %c0_25 = arith.constant 0 : index
    %29 = vector.load %arg8[%c1_23, %c0_24, %c0_25] : memref<2x16x32xf32, #tpu.memory_space<vmem>>, vector<1x16x32xf32>
    %30 = vector.shape_cast %29 : vector<1x16x32xf32> to vector<16x32xf32>
    %31 = vector.shape_cast %28 : vector<16x32xf32> to vector<1x16x32xf32>
    tpu.vector_store %arg8[%c1_23, %c0_24, %c0_25], %31 {strides = array<i32>} : memref<2x16x32xf32, #tpu.memory_space<vmem>>, vector<1x16x32xf32>,
    return
  }
  func.func @transform_0(%arg0: i32, %arg1: i32) -> (i32, i32) {
    %c0_i32 = arith.constant 0 : i32
    %c0_i32_0 = arith.constant 0 : i32
    return %arg0, %c0_i32 : i32, i32
  }
  func.func @transform_1(%arg0: i32, %arg1: i32) -> (i32, i32) {
    %c0_i32 = arith.constant 0 : i32
    %c0_i32_0 = arith.constant 0 : i32
    return %c0_i32, %arg1 : i32, i32
  }
  func.func @transform_2(%arg0: i32, %arg1: i32) -> (i32, i32) {
    %c0_i32 = arith.constant 0 : i32
    %c0_i32_0 = arith.constant 0 : i32
    return %c0_i32, %arg1 : i32, i32
  }
  func.func @transform_3(%arg0: i32, %arg1: i32) -> (i32, i32) {
    %c0_i32 = arith.constant 0 : i32
    %c0_i32_0 = arith.constant 0 : i32
    %c0_i32_1 = arith.constant 0 : i32
    return %c0_i32, %c0_i32_0 : i32, i32
  }
  func.func @transform_4(%arg0: i32, %arg1: i32) -> (i32, i32, i32) {
    %c0_i32 = arith.constant 0 : i32
    %c0_i32_0 = arith.constant 0 : i32
    %c0_i32_1 = arith.constant 0 : i32
    return %c0_i32, %c0_i32_0, %arg1 : i32, i32, i32
  }
  func.func @transform_5(%arg0: i32, %arg1: i32) -> (i32, i32) {
    %c0_i32 = arith.constant 0 : i32
    return %arg0, %arg1 : i32, i32
  }
  func.func @transform_6(%arg0: i32, %arg1: i32) -> (i32, i32, i32) {
    %c0_i32 = arith.constant 0 : i32
    %c0_i32_0 = arith.constant 0 : i32
    return %c0_i32, %arg0, %arg1 : i32, i32, i32
  }
}

</mosaic_0001>

<llo_original>
// kernel: tpu_custom_call.1
$region0: #{tpu_custom_call.1}
  #allocation0 [shape = 'u32[]', space=smem, size = 0x4, offset = 0x4, fixed_abs, tag = 'smem constant byte address 0x4 - core index']
  #allocation1 [shape = 'u32[144,128]{1,0:T(1,128)}', space=vmem, size = 0x12000, scoped, tag = 'internal scratch']
  #allocation2 [shape = 'f32[16,12]{1,0:T(8,128)}', space=vmem, size = 0x2000, scoped, tag = 'scratch operand']
  %s0 = inlined_call_operand.vmem [shape: f32[16,32], index: 0, kind: input, shape index: {}]
  %s1 = inlined_call_operand.vmem [shape: f32[32,32], index: 1, kind: input, shape index: {}]
  %s2 = inlined_call_operand.vmem [shape: f32[1,32], index: 2, kind: input, shape index: {}]
  %s3 = inlined_call_operand.vmem [shape: f32[32,12], index: 3, kind: input, shape index: {}]
  %s4 = inlined_call_operand.hbm [shape: f32[3,4,32], index: 4, kind: input, shape index: {}]
  %s5 = inlined_call_operand.hbm [shape: f32[16,32], index: 5, kind: output, shape index: {0}]
  %s6 = inlined_call_operand.hbm [shape: f32[2,16,32], index: 6, kind: output, shape index: {1}]
  %7 = xla_tuple %s5, %s6
  %s8 = sld [smem:[#allocation0]]
  $region46: #{tpu_custom_call.1} parent=0
    _
  %s10 = ssub.s32 1, %s8
  %s11 = scalar_select 0, %s10, %s8
  $region1: #{tpu_custom_call.1} parent=0
    #allocation3 [shape = 'u8[6144]{0}', space=vmem, size = 0x1800, scoped, tag = 'input window, operand 4, single buffered']
    #allocation4 [shape = 's32[1]{0}', space=sflag, size = 0x4, scoped, tag = 'scoped memory for tpu_custom_call.1']
    #allocation5 [shape = 's32[1]{0}', space=sflag, size = 0x4, scoped, tag = 'scoped memory for tpu_custom_call.1']
    #allocation6 [shape = 'u8[8192]{0}', space=vmem, size = 0x2000, scoped, tag = 'output window, operand 0, single buffered']
    #allocation7 [shape = 'u8[16384]{0}', space=vmem, size = 0x4000, scoped, tag = 'output window, operand 1, single buffered']
    #allocation8 [shape = 's32[1]{0}', space=sflag, size = 0x4, scoped, tag = 'scoped memory for tpu_custom_call.1']
    %12 = vsyncpa [#allocation4], 0
    %13 = vsyncpa [#allocation5], 0
    %14 = vsyncpa [#allocation8], 0
    // Predicated region
    $region2: #{tpu_custom_call.1} parent=1 // pred_check
      _
    $region3: #{tpu_custom_call.1} parent=1 // pred_check_branch
      %16 = sbr.rel (0) target = $region5
    $region4: #{tpu_custom_call.1} parent=1 // pred_region
      _
    $region5: #{tpu_custom_call.1} parent=1 // pred_fallthru
      _
    // Predicated region
    $region6: #{tpu_custom_call.1} parent=1 // pred_check
      _
    $region7: #{tpu_custom_call.1} parent=1 // pred_check_branch
      %18 = sbr.rel (0) target = $region9
    $region8: #{tpu_custom_call.1} parent=1 // pred_region
      _
    $region9: #{tpu_custom_call.1} parent=1 // pred_fallthru
      _
    // Predicated region
    $region10: #{tpu_custom_call.1} parent=1 // pred_check
      _
    $region11: #{tpu_custom_call.1} parent=1 // pred_check_branch
      %20 = sbr.rel (0) target = $region13
    $region12: #{tpu_custom_call.1} parent=1 // pred_region
      _
    $region13: #{tpu_custom_call.1} parent=1 // pred_fallthru
      _
    // Predicated region
    $region14: #{tpu_custom_call.1} parent=1 // pred_check
      _
    $region15: #{tpu_custom_call.1} parent=1 // pred_check_branch
      %22 = sbr.rel (0) target = $region17
    $region16: #{tpu_custom_call.1} parent=1 // pred_region
      _
    $region17: #{tpu_custom_call.1} parent=1 // pred_fallthru
      _
    // Predicated region
    $region18: #{tpu_custom_call.1} parent=1 // pred_check
      _
    $region19: #{tpu_custom_call.1} parent=1 // pred_check_branch
      %24 = sbr.rel (0) target = $region21
    $region20: #{tpu_custom_call.1} parent=1 // pred_region
      %s26 = ssub.s32 192, 192
      %27 = vsyncadd [#allocation4], %s26
      %s28 = sshll.u32 [#allocation3], 4
      %s29 = int_to_ptr.vmem [resolvable:$true] %s28
      %34 = dma.hbm_to_vmem [thread:$0]  %s4, 192, %s29, [#allocation4], 64, 64, 4
    $region21: #{tpu_custom_call.1} parent=1 // pred_fallthru
      _
    // Predicated region
    $region22: #{tpu_custom_call.1} parent=1 // pred_check
      _
    $region23: #{tpu_custom_call.1} parent=1 // pred_check_branch
      %36 = sbr.rel (0) target = $region25
    $region24: #{tpu_custom_call.1} parent=1 // pred_region
      %37 = dma.done [#allocation4], 192
    $region25: #{tpu_custom_call.1} parent=1 // pred_fallthru
      _
    %p38 = scmp.eq.s32.totalorder 0, 0
    // Predicated region
    $region26: #{tpu_custom_call.1} parent=1 // pred_check
      %p39 = pneg %p38
    $region27: #{tpu_custom_call.1} parent=1 // pred_check_branch
      %41 = sbr.rel (%p39) target = $region29
    $region28: #{tpu_custom_call.1} parent=1 // pred_region
      %v42 = vld [vmem:[%s0] sm:$0xff]
      %v43 = vld [vmem:[%s0 + $0x8] sm:$0xff]
      %v44 = vld [vmem:[%s3] sm:$0xff]
      %v45 = vld [vmem:[%s3 + $0x8] sm:$0xff]
      %v46 = vld [vmem:[%s3 + $0x10] sm:$0xff]
      %v47 = vld [vmem:[%s3 + $0x18] sm:$0xff]
      %vm48 = vcmask 261120
      %v50 = vsel %vm48, %v42, 0
      %v53 = vsel %vm48, %v43, 0
      %55 = vmatprep.subr.mxu0 0.0
      %56 = vmatpush1.msra.mxu0 0.0
      %57 = vmatprep.subr.mxu0 0.0
      %58 = vmatpush1.msra.mxu0 0.0
      %59 = vmatprep.subr.mxu0 0.0
      %60 = vmatpush1.msra.mxu0 0.0
      %61 = vmatprep.subr.mxu0 0.0
      %62 = vmatpush1.msra.mxu0 0.0
      %63 = vmatprep.subr.mxu0 0.0
      %64 = vmatpush1.msra.mxu0 0.0
      %65 = vmatprep.subr.mxu0 0.0
      %66 = vmatpush1.msra.mxu0 0.0
      %67 = vmatprep.subr.mxu0 0.0
      %68 = vmatpush1.msra.mxu0 0.0
      %69 = vmatprep.subr.mxu0 0.0
      %70 = vmatpush1.msra.mxu0 0.0
      %71 = vmatprep.subr.mxu0 0.0
      %72 = vmatpush1.msra.mxu0 0.0
      %73 = vmatprep.subr.mxu0 0.0
      %74 = vmatpush1.msra.mxu0 0.0
      %75 = vmatprep.subr.mxu0 0.0
      %76 = vmatpush1.msra.mxu0 0.0
      %77 = vmatprep.subr.mxu0 0.0
      %78 = vmatpush1.msra.mxu0 0.0
      %79 = vmatprep.subr.mxu0 0.0
      %80 = vmatpush1.msra.mxu0 %v47
      %81 = vmatprep.subr.mxu0 0.0
      %82 = vmatpush1.msra.mxu0 %v46
      %83 = vmatprep.subr.mxu0 0.0
      %84 = vmatpush1.msra.mxu0 %v45
      %85 = vmatprep.subr.mxu0 0.0
      %86 = vmatpush1.msra.mxu0 %v44
      %87 = vmatprep.subr.mxu0 0.0
      %88 = vmatpush2.msra.mxu0 0.0
      %89 = vmatprep.subr.mxu0 0.0
      %90 = vmatpush2.msra.mxu0 0.0
      %91 = vmatprep.subr.mxu0 0.0
      %92 = vmatpush2.msra.mxu0 0.0
      %93 = vmatprep.subr.mxu0 0.0
      %94 = vmatpush2.msra.mxu0 0.0
      %95 = vmatprep.subr.mxu0 0.0
      %96 = vmatpush2.msra.mxu0 0.0
      %97 = vmatprep.subr.mxu0 0.0
      %98 = vmatpush2.msra.mxu0 0.0
      %99 = vmatprep.subr.mxu0 0.0
      %100 = vmatpush2.msra.mxu0 0.0
      %101 = vmatprep.subr.mxu0 0.0
      %102 = vmatpush2.msra.mxu0 0.0
      %103 = vmatprep.subr.mxu0 0.0
      %104 = vmatpush2.msra.mxu0 0.0
      %105 = vmatprep.subr.mxu0 0.0
      %106 = vmatpush2.msra.mxu0 0.0
      %107 = vmatprep.subr.mxu0 0.0
      %108 = vmatpush2.msra.mxu0 0.0
      %109 = vmatprep.subr.mxu0 0.0
      %110 = vmatpush2.msra.mxu0 0.0
      %111 = vmatprep.subr.mxu0 0.0
      %112 = vmatpush2.msra.mxu0 0.0
      %113 = vmatprep.subr.mxu0 0.0
      %114 = vmatpush2.msra.mxu0 0.0
      %115 = vmatprep.subr.mxu0 0.0
      %116 = vmatpush2.msra.mxu0 0.0
      %117 = vmatprep.subr.mxu0 0.0
      %118 = vmatpush2.msra.mxu0 0.0
      %119 = vmatprep.mubr.f32.mxu0 0.0
      %120 = vmatmul.mubr.f32.gmra.mxu0 %v50
      %v121 = vpop.f32.mrf.mxu0
      %v122 = vadd.f32 0.0, %v121
      %v123 = vpop.f32.mrf.mxu0
      %124 = vmatprep.mubr.f32.mxu0 0.0
      %125 = vmatmul.mubr.f32.gmra.mxu0 %v53
      %v126 = vpop.f32.mrf.mxu0
      %v127 = vadd.f32 0.0, %v126
      %v128 = vpop.f32.mrf.mxu0
      %129 = vdwg.mxu0
      %vm130 = vcmask 97280
      %131 = vst.msk [vmem:[#allocation2] sm:$0xff] %vm130, %v122
      %132 = vst.msk [vmem:[#allocation2 + $0x8] sm:$0xff] %vm130, %v127
    $region29: #{tpu_custom_call.1} parent=1 // pred_fallthru
      _
    %v133 = vld [vmem:[%s0] sm:$0xff]
    %v134 = vld [vmem:[%s0 + $0x8] sm:$0xff]
    %v135 = vld [vmem:[%s1] sm:$0xff]
    %v136 = vld [vmem:[%s1 + $0x8] sm:$0xff]
    %v137 = vld [vmem:[%s1 + $0x10] sm:$0xff]
    %v138 = vld [vmem:[%s1 + $0x18] sm:$0xff]
    %v139 = vld [vmem:[%s2] sm:$0x1]
    %v141 = vlaneseq
    %v142 = vshrl.u32 %v141, 7
    %v143 = vsub.s32 0, %v142
    %v144 = vrot.slane %v139, %v143
    %vm146 = vcmask 261120
    %v148 = vsel %vm146, %v133, 0
    %v151 = vsel %vm146, %v134, 0
    %153 = vmatprep.subr.mxu0 0.0
    %154 = vmatpush1.msra.mxu0 0.0
    %155 = vmatprep.subr.mxu0 0.0
    %156 = vmatpush1.msra.mxu0 0.0
    %157 = vmatprep.subr.mxu0 0.0
    %158 = vmatpush1.msra.mxu0 0.0
    %159 = vmatprep.subr.mxu0 0.0
    %160 = vmatpush1.msra.mxu0 0.0
    %161 = vmatprep.subr.mxu0 0.0
    %162 = vmatpush1.msra.mxu0 0.0
    %163 = vmatprep.subr.mxu0 0.0
    %164 = vmatpush1.msra.mxu0 0.0
    %165 = vmatprep.subr.mxu0 0.0
    %166 = vmatpush1.msra.mxu0 0.0
    %167 = vmatprep.subr.mxu0 0.0
    %168 = vmatpush1.msra.mxu0 0.0
    %169 = vmatprep.subr.mxu0 0.0
    %170 = vmatpush1.msra.mxu0 0.0
    %171 = vmatprep.subr.mxu0 0.0
    %172 = vmatpush1.msra.mxu0 0.0
    %173 = vmatprep.subr.mxu0 0.0
    %174 = vmatpush1.msra.mxu0 0.0
    %175 = vmatprep.subr.mxu0 0.0
    %176 = vmatpush1.msra.mxu0 0.0
    %177 = vmatprep.subr.mxu0 0.0
    %178 = vmatpush1.msra.mxu0 %v138
    %179 = vmatprep.subr.mxu0 0.0
    %180 = vmatpush1.msra.mxu0 %v137
    %181 = vmatprep.subr.mxu0 0.0
    %182 = vmatpush1.msra.mxu0 %v136
    %183 = vmatprep.subr.mxu0 0.0
    %184 = vmatpush1.msra.mxu0 %v135
    %185 = vmatprep.subr.mxu0 0.0
    %186 = vmatpush2.msra.mxu0 0.0
    %187 = vmatprep.subr.mxu0 0.0
    %188 = vmatpush2.msra.mxu0 0.0
    %189 = vmatprep.subr.mxu0 0.0
    %190 = vmatpush2.msra.mxu0 0.0
    %191 = vmatprep.subr.mxu0 0.0
    %192 = vmatpush2.msra.mxu0 0.0
    %193 = vmatprep.subr.mxu0 0.0
    %194 = vmatpush2.msra.mxu0 0.0
    %195 = vmatprep.subr.mxu0 0.0
    %196 = vmatpush2.msra.mxu0 0.0
    %197 = vmatprep.subr.mxu0 0.0
    %198 = vmatpush2.msra.mxu0 0.0
    %199 = vmatprep.subr.mxu0 0.0
    %200 = vmatpush2.msra.mxu0 0.0
    %201 = vmatprep.subr.mxu0 0.0
    %202 = vmatpush2.msra.mxu0 0.0
    %203 = vmatprep.subr.mxu0 0.0
    %204 = vmatpush2.msra.mxu0 0.0
    %205 = vmatprep.subr.mxu0 0.0
    %206 = vmatpush2.msra.mxu0 0.0
    %207 = vmatprep.subr.mxu0 0.0
    %208 = vmatpush2.msra.mxu0 0.0
    %209 = vmatprep.subr.mxu0 0.0
    %210 = vmatpush2.msra.mxu0 0.0
    %211 = vmatprep.subr.mxu0 0.0
    %212 = vmatpush2.msra.mxu0 0.0
    %213 = vmatprep.subr.mxu0 0.0
    %214 = vmatpush2.msra.mxu0 0.0
    %215 = vmatprep.subr.mxu0 0.0
    %216 = vmatpush2.msra.mxu0 0.0
    %217 = vmatprep.mubr.f32.mxu0 0.0
    %218 = vmatmul.mubr.f32.gmra.mxu0 %v148
    %v219 = vpop.f32.mrf.mxu0
    %v220 = vadd.f32 %v144, %v219
    %v221 = vpop.f32.mrf.mxu0
    %222 = vmatprep.mubr.f32.mxu0 0.0
    %223 = vmatmul.mubr.f32.gmra.mxu0 %v151
    %v224 = vpop.f32.mrf.mxu0
    %v225 = vadd.f32 %v144, %v224
    %v226 = vpop.f32.mrf.mxu0
    %227 = vdwg.mxu0
    %v228 = vld [vmem:[#allocation2] sm:$0xff]
    %v229 = vld [vmem:[#allocation2 + $0x8] sm:$0xff]
    %v230 = vld [vmem:[#allocation3] sm:$0xf]
    %vm231 = vcmask 31744
    %v233 = vsel %vm231, %v228, 0
    %v236 = vsel %vm231, %v229, 0
    %vm238 = vcmask 1043456
    %v240 = vsel %vm238, %v230, 0
    %242 = vmatprep.subr.mxu0 0.0
    %243 = vmatpush1.msra.mxu0 0.0
    %244 = vmatprep.subr.mxu0 0.0
    %245 = vmatpush1.msra.mxu0 0.0
    %246 = vmatprep.subr.mxu0 0.0
    %247 = vmatpush1.msra.mxu0 0.0
    %248 = vmatprep.subr.mxu0 0.0
    %249 = vmatpush1.msra.mxu0 0.0
    %250 = vmatprep.subr.mxu0 0.0
    %251 = vmatpush1.msra.mxu0 0.0
    %252 = vmatprep.subr.mxu0 0.0
    %253 = vmatpush1.msra.mxu0 0.0
    %254 = vmatprep.subr.mxu0 0.0
    %255 = vmatpush1.msra.mxu0 0.0
    %256 = vmatprep.subr.mxu0 0.0
    %257 = vmatpush1.msra.mxu0 0.0
    %258 = vmatprep.subr.mxu0 0.0
    %259 = vmatpush1.msra.mxu0 0.0
    %260 = vmatprep.subr.mxu0 0.0
    %261 = vmatpush1.msra.mxu0 0.0
    %262 = vmatprep.subr.mxu0 0.0
    %263 = vmatpush1.msra.mxu0 0.0
    %264 = vmatprep.subr.mxu0 0.0
    %265 = vmatpush1.msra.mxu0 0.0
    %266 = vmatprep.subr.mxu0 0.0
    %267 = vmatpush1.msra.mxu0 0.0
    %268 = vmatprep.subr.mxu0 0.0
    %269 = vmatpush1.msra.mxu0 0.0
    %270 = vmatprep.subr.mxu0 0.0
    %271 = vmatpush1.msra.mxu0 0.0
    %272 = vmatprep.subr.mxu0 0.0
    %273 = vmatpush1.msra.mxu0 %v240
    %274 = vmatprep.subr.mxu0 0.0
    %275 = vmatpush2.msra.mxu0 0.0
    %276 = vmatprep.subr.mxu0 0.0
    %277 = vmatpush2.msra.mxu0 0.0
    %278 = vmatprep.subr.mxu0 0.0
    %279 = vmatpush2.msra.mxu0 0.0
    %280 = vmatprep.subr.mxu0 0.0
    %281 = vmatpush2.msra.mxu0 0.0
    %282 = vmatprep.subr.mxu0 0.0
    %283 = vmatpush2.msra.mxu0 0.0
    %284 = vmatprep.subr.mxu0 0.0
    %285 = vmatpush2.msra.mxu0 0.0
    %286 = vmatprep.subr.mxu0 0.0
    %287 = vmatpush2.msra.mxu0 0.0
    %288 = vmatprep.subr.mxu0 0.0
    %289 = vmatpush2.msra.mxu0 0.0
    %290 = vmatprep.subr.mxu0 0.0
    %291 = vmatpush2.msra.mxu0 0.0
    %292 = vmatprep.subr.mxu0 0.0
    %293 = vmatpush2.msra.mxu0 0.0
    %294 = vmatprep.subr.mxu0 0.0
    %295 = vmatpush2.msra.mxu0 0.0
    %296 = vmatprep.subr.mxu0 0.0
    %297 = vmatpush2.msra.mxu0 0.0
    %298 = vmatprep.subr.mxu0 0.0
    %299 = vmatpush2.msra.mxu0 0.0
    %300 = vmatprep.subr.mxu0 0.0
    %301 = vmatpush2.msra.mxu0 0.0
    %302 = vmatprep.subr.mxu0 0.0
    %303 = vmatpush2.msra.mxu0 0.0
    %304 = vmatprep.subr.mxu0 0.0
    %305 = vmatpush2.msra.mxu0 0.0
    %306 = vmatprep.mubr.f32.mxu0 0.0
    %307 = vmatmul.mubr.f32.gmra.mxu0 %v233
    %v308 = vpop.f32.mrf.mxu0
    %v309 = vadd.f32 0.0, %v308
    %v310 = vpop.f32.mrf.mxu0
    %311 = vmatprep.mubr.f32.mxu0 0.0
    %312 = vmatmul.mubr.f32.gmra.mxu0 %v236
    %v313 = vpop.f32.mrf.mxu0
    %v314 = vadd.f32 0.0, %v313
    %v315 = vpop.f32.mrf.mxu0
    %316 = vdwg.mxu0
    %v317 = vadd.f32 %v220, %v309
    %v318 = vadd.f32 %v225, %v314
    %319 = vst.msk [vmem:[#allocation6] sm:$0xff] %vm146, %v317
    %320 = vst.msk [vmem:[#allocation6 + $0x8] sm:$0xff] %vm146, %v318
    %s321 = scalar_lea.vmem [#allocation3], 4
    %v322 = vld [vmem:[%s321] sm:$0xf]
    %323 = vrot.lane.b32.xlu0 %v228, 124
    %v324 = vpop.permute.xlu0 %323
    %325 = vrot.lane.b32.xlu0 %v229, 124
    %v326 = vpop.permute.xlu0 %325
    %v327 = vsel %vm231, %v324, 0
    %v329 = vsel %vm231, %v326, 0
    %v332 = vsel %vm238, %v322, 0
    %334 = vmatprep.subr.mxu0 0.0
    %335 = vmatpush1.msra.mxu0 0.0
    %336 = vmatprep.subr.mxu0 0.0
    %337 = vmatpush1.msra.mxu0 0.0
    %338 = vmatprep.subr.mxu0 0.0
    %339 = vmatpush1.msra.mxu0 0.0
    %340 = vmatprep.subr.mxu0 0.0
    %341 = vmatpush1.msra.mxu0 0.0
    %342 = vmatprep.subr.mxu0 0.0
    %343 = vmatpush1.msra.mxu0 0.0
    %344 = vmatprep.subr.mxu0 0.0
    %345 = vmatpush1.msra.mxu0 0.0
    %346 = vmatprep.subr.mxu0 0.0
    %347 = vmatpush1.msra.mxu0 0.0
    %348 = vmatprep.subr.mxu0 0.0
    %349 = vmatpush1.msra.mxu0 0.0
    %350 = vmatprep.subr.mxu0 0.0
    %351 = vmatpush1.msra.mxu0 0.0
    %352 = vmatprep.subr.mxu0 0.0
    %353 = vmatpush1.msra.mxu0 0.0
    %354 = vmatprep.subr.mxu0 0.0
    %355 = vmatpush1.msra.mxu0 0.0
    %356 = vmatprep.subr.mxu0 0.0
    %357 = vmatpush1.msra.mxu0 0.0
    %358 = vmatprep.subr.mxu0 0.0
    %359 = vmatpush1.msra.mxu0 0.0
    %360 = vmatprep.subr.mxu0 0.0
    %361 = vmatpush1.msra.mxu0 0.0
    %362 = vmatprep.subr.mxu0 0.0
    %363 = vmatpush1.msra.mxu0 0.0
    %364 = vmatprep.subr.mxu0 0.0
    %365 = vmatpush1.msra.mxu0 %v332
    %366 = vmatprep.subr.mxu0 0.0
    %367 = vmatpush2.msra.mxu0 0.0
    %368 = vmatprep.subr.mxu0 0.0
    %369 = vmatpush2.msra.mxu0 0.0
    %370 = vmatprep.subr.mxu0 0.0
    %371 = vmatpush2.msra.mxu0 0.0
    %372 = vmatprep.subr.mxu0 0.0
    %373 = vmatpush2.msra.mxu0 0.0
    %374 = vmatprep.subr.mxu0 0.0
    %375 = vmatpush2.msra.mxu0 0.0
    %376 = vmatprep.subr.mxu0 0.0
    %377 = vmatpush2.msra.mxu0 0.0
    %378 = vmatprep.subr.mxu0 0.0
    %379 = vmatpush2.msra.mxu0 0.0
    %380 = vmatprep.subr.mxu0 0.0
    %381 = vmatpush2.msra.mxu0 0.0
    %382 = vmatprep.subr.mxu0 0.0
    %383 = vmatpush2.msra.mxu0 0.0
    %384 = vmatprep.subr.mxu0 0.0
    %385 = vmatpush2.msra.mxu0 0.0
    %386 = vmatprep.subr.mxu0 0.0
    %387 = vmatpush2.msra.mxu0 0.0
    %388 = vmatprep.subr.mxu0 0.0
    %389 = vmatpush2.msra.mxu0 0.0
    %390 = vmatprep.subr.mxu0 0.0
    %391 = vmatpush2.msra.mxu0 0.0
    %392 = vmatprep.subr.mxu0 0.0
    %393 = vmatpush2.msra.mxu0 0.0
    %394 = vmatprep.subr.mxu0 0.0
    %395 = vmatpush2.msra.mxu0 0.0
    %396 = vmatprep.subr.mxu0 0.0
    %397 = vmatpush2.msra.mxu0 0.0
    %398 = vmatprep.mubr.f32.mxu0 0.0
    %399 = vmatmul.mubr.f32.gmra.mxu0 %v327
    %v400 = vpop.f32.mrf.mxu0
    %v401 = vadd.f32 0.0, %v400
    %v402 = vpop.f32.mrf.mxu0
    %403 = vmatprep.mubr.f32.mxu0 0.0
    %404 = vmatmul.mubr.f32.gmra.mxu0 %v329
    %v405 = vpop.f32.mrf.mxu0
    %v406 = vadd.f32 0.0, %v405
    %v407 = vpop.f32.mrf.mxu0
    %408 = vdwg.mxu0
    %v409 = vadd.f32 %v317, %v401
    %v410 = vadd.f32 %v318, %v406
    %411 = vst.msk [vmem:[#allocation7] sm:$0xff] %vm146, %v409
    %412 = vst.msk [vmem:[#allocation7 + $0x8] sm:$0xff] %vm146, %v410
    %s413 = scalar_lea.vmem [#allocation3], 8
    %v414 = vld [vmem:[%s413] sm:$0xf]
    %415 = vrot.lane.b32.xlu0 %v228, 120
    %v416 = vpop.permute.xlu0 %415
    %417 = vrot.lane.b32.xlu0 %v229, 120
    %v418 = vpop.permute.xlu0 %417
    %v419 = vsel %vm231, %v416, 0
    %v421 = vsel %vm231, %v418, 0
    %v424 = vsel %vm238, %v414, 0
    %426 = vmatprep.subr.mxu0 0.0
    %427 = vmatpush1.msra.mxu0 0.0
    %428 = vmatprep.subr.mxu0 0.0
    %429 = vmatpush1.msra.mxu0 0.0
    %430 = vmatprep.subr.mxu0 0.0
    %431 = vmatpush1.msra.mxu0 0.0
    %432 = vmatprep.subr.mxu0 0.0
    %433 = vmatpush1.msra.mxu0 0.0
    %434 = vmatprep.subr.mxu0 0.0
    %435 = vmatpush1.msra.mxu0 0.0
    %436 = vmatprep.subr.mxu0 0.0
    %437 = vmatpush1.msra.mxu0 0.0
    %438 = vmatprep.subr.mxu0 0.0
    %439 = vmatpush1.msra.mxu0 0.0
    %440 = vmatprep.subr.mxu0 0.0
    %441 = vmatpush1.msra.mxu0 0.0
    %442 = vmatprep.subr.mxu0 0.0
    %443 = vmatpush1.msra.mxu0 0.0
    %444 = vmatprep.subr.mxu0 0.0
    %445 = vmatpush1.msra.mxu0 0.0
    %446 = vmatprep.subr.mxu0 0.0
    %447 = vmatpush1.msra.mxu0 0.0
    %448 = vmatprep.subr.mxu0 0.0
    %449 = vmatpush1.msra.mxu0 0.0
    %450 = vmatprep.subr.mxu0 0.0
    %451 = vmatpush1.msra.mxu0 0.0
    %452 = vmatprep.subr.mxu0 0.0
    %453 = vmatpush1.msra.mxu0 0.0
    %454 = vmatprep.subr.mxu0 0.0
    %455 = vmatpush1.msra.mxu0 0.0
    %456 = vmatprep.subr.mxu0 0.0
    %457 = vmatpush1.msra.mxu0 %v424
    %458 = vmatprep.subr.mxu0 0.0
    %459 = vmatpush2.msra.mxu0 0.0
    %460 = vmatprep.subr.mxu0 0.0
    %461 = vmatpush2.msra.mxu0 0.0
    %462 = vmatprep.subr.mxu0 0.0
    %463 = vmatpush2.msra.mxu0 0.0
    %464 = vmatprep.subr.mxu0 0.0
    %465 = vmatpush2.msra.mxu0 0.0
    %466 = vmatprep.subr.mxu0 0.0
    %467 = vmatpush2.msra.mxu0 0.0
    %468 = vmatprep.subr.mxu0 0.0
    %469 = vmatpush2.msra.mxu0 0.0
    %470 = vmatprep.subr.mxu0 0.0
    %471 = vmatpush2.msra.mxu0 0.0
    %472 = vmatprep.subr.mxu0 0.0
    %473 = vmatpush2.msra.mxu0 0.0
    %474 = vmatprep.subr.mxu0 0.0
    %475 = vmatpush2.msra.mxu0 0.0
    %476 = vmatprep.subr.mxu0 0.0
    %477 = vmatpush2.msra.mxu0 0.0
    %478 = vmatprep.subr.mxu0 0.0
    %479 = vmatpush2.msra.mxu0 0.0
    %480 = vmatprep.subr.mxu0 0.0
    %481 = vmatpush2.msra.mxu0 0.0
    %482 = vmatprep.subr.mxu0 0.0
    %483 = vmatpush2.msra.mxu0 0.0
    %484 = vmatprep.subr.mxu0 0.0
    %485 = vmatpush2.msra.mxu0 0.0
    %486 = vmatprep.subr.mxu0 0.0
    %487 = vmatpush2.msra.mxu0 0.0
    %488 = vmatprep.subr.mxu0 0.0
    %489 = vmatpush2.msra.mxu0 0.0
    %490 = vmatprep.mubr.f32.mxu0 0.0
    %491 = vmatmul.mubr.f32.gmra.mxu0 %v419
    %v492 = vpop.f32.mrf.mxu0
    %v493 = vadd.f32 0.0, %v492
    %v494 = vpop.f32.mrf.mxu0
    %495 = vmatprep.mubr.f32.mxu0 0.0
    %496 = vmatmul.mubr.f32.gmra.mxu0 %v421
    %v497 = vpop.f32.mrf.mxu0
    %v498 = vadd.f32 0.0, %v497
    %v499 = vpop.f32.mrf.mxu0
    %500 = vdwg.mxu0
    %v501 = vadd.f32 %v317, %v493
    %v502 = vadd.f32 %v318, %v498
    %s503 = scalar_lea.vmem [#allocation7], 16
    %504 = vst.msk [vmem:[%s503] sm:$0xff] %vm146, %v501
    %505 = vst.msk [vmem:[%s503 + $0x8] sm:$0xff] %vm146, %v502
    // Predicated region
    $region30: #{tpu_custom_call.1} parent=1 // pred_check
      _
    $region31: #{tpu_custom_call.1} parent=1 // pred_check_branch
      %507 = sbr.rel (0) target = $region33
    $region32: #{tpu_custom_call.1} parent=1 // pred_region
      %s509 = ssub.s32 256, 256
      %510 = vsyncadd [#allocation5], %s509
      %s511 = sshll.u32 [#allocation6], 4
      %s512 = int_to_ptr.vmem [resolvable:$true] %s511
      %517 = dma.vmem_to_hbm [thread:$0]  %s512, 256, %s5, [#allocation5], 128, 128, 8
    $region33: #{tpu_custom_call.1} parent=1 // pred_fallthru
      _
    // Predicated region
    $region34: #{tpu_custom_call.1} parent=1 // pred_check
      _
    $region35: #{tpu_custom_call.1} parent=1 // pred_check_branch
      %519 = sbr.rel (0) target = $region37
    $region36: #{tpu_custom_call.1} parent=1 // pred_region
      %s521 = ssub.s32 512, 512
      %522 = vsyncadd [#allocation8], %s521
      %s523 = sshll.u32 [#allocation7], 4
      %s524 = int_to_ptr.vmem [resolvable:$true] %s523
      %529 = dma.vmem_to_hbm [thread:$0]  %s524, 512, %s6, [#allocation8], 128, 128, 8
    $region37: #{tpu_custom_call.1} parent=1 // pred_fallthru
      _
    // Predicated region
    $region38: #{tpu_custom_call.1} parent=1 // pred_check
      _
    $region39: #{tpu_custom_call.1} parent=1 // pred_check_branch
      %531 = sbr.rel (0) target = $region41
    $region40: #{tpu_custom_call.1} parent=1 // pred_region
      %532 = dma.done [#allocation5], 256
    $region41: #{tpu_custom_call.1} parent=1 // pred_fallthru
      _
    // Predicated region
    $region42: #{tpu_custom_call.1} parent=1 // pred_check
      _
    $region43: #{tpu_custom_call.1} parent=1 // pred_check_branch
      %534 = sbr.rel (0) target = $region45
    $region44: #{tpu_custom_call.1} parent=1 // pred_region
      %535 = dma.done [#allocation8], 512
    $region45: #{tpu_custom_call.1} parent=1 // pred_fallthru
      _
    %536 = vsyncpa [#allocation4], 1
    %537 = vsyncpa [#allocation5], 1
    %538 = vsyncpa [#allocation8], 1

</llo_original>
